<compile_context>
chip_gen: v5e
topology: v5e:2x2
jax: 0.10.0
libtpu: 0.0.40
codegen_flags: <defaults>
</compile_context>

<pallas_src>
import functools

import jax
import jax.numpy as jnp
from jax import lax
from jax.experimental import pallas as pl
from jax.experimental.pallas import tpu as pltpu


def _convlstm_kernel(xs_ref, w_ref, b_ref, c_ref, out_ref, *,
                     k, W, HW, oc, chunk):
    """One batch image of the ConvLSTM cell.

    xs_ref : (Hp*W, k*C)   bf16  padded input, k width-shifts folded into lanes
    w_ref  : (k, k*C, 4oc) bf16  conv weight, one (k*C, 4oc) matrix per ki tap
    b_ref  : (1, 4*oc)     f32   conv bias
    c_ref  : (HW, oc)      f32   previous cell state (flattened NHWC)
    out_ref: (HW, 2*oc)    f32   merged [new hidden | new cell]
    """
    bias = b_ref[...]                                   # (1, 4*oc) f32
    n_chunks = HW // chunk

    def chunk_body(ci, _):
        m0 = ci * chunk

        # Convolution: k tap-matmuls with K = k*C contraction depth
        # (bf16 inputs, f32 accumulation on the MXU).  Tap ki of output pixel
        # (h, w) reads xs row (h + ki)*W + w, i.e. a contiguous, sublane-
        # aligned row window of xs.
        acc = jnp.zeros((chunk, 4 * oc), jnp.float32)
        for ki in range(k):                             # static, k = 3
            start = pl.multiple_of(m0 + ki * W, 8)
            lhs = xs_ref[pl.ds(start, chunk), :]        # (chunk, k*C) bf16
            acc = acc + jnp.dot(lhs, w_ref[ki],
                                preferred_element_type=jnp.float32)
        gates = acc + bias                              # (chunk, 4*oc) f32

        # Gate order matches torch.chunk(4, dim=1): [in, forget, out, cell].
        sig = jax.nn.sigmoid(gates[:, :3 * oc])         # one 96-lane EUP slab
        g_cell = jnp.tanh(gates[:, 3 * oc:])            # one 32-lane EUP slab
        g_in = sig[:, :oc]
        g_forget = sig[:, oc:2 * oc]
        g_out = sig[:, 2 * oc:3 * oc]

        row = pl.ds(pl.multiple_of(m0, 8), chunk)
        c_prev = c_ref[row, :]                          # (chunk, oc) f32
        y_cell = g_forget * c_prev + g_in * g_cell
        y_hidden = g_out * jnp.tanh(y_cell)

        out_ref[row, pl.ds(0, oc)] = y_hidden
        out_ref[row, pl.ds(oc, oc)] = y_cell
        return 0

    lax.fori_loop(0, n_chunks, chunk_body, 0)


@functools.partial(jax.jit, static_argnames=("kernel_size",))
def conv_lstm_forward(x, h_prev, c_prev, weight_oihw, bias, *, kernel_size):
    """ConvLSTM cell. x: (B, Cin, H, W); h_prev/c_prev: (B, Cout, H, W) NCHW.

    weight_oihw: (4*Cout, Cin+Cout, k, k), bias: (4*Cout,).
    Returns (y_hidden, y_cell): y_hidden in x.dtype, y_cell kept in f32 so the
    recurrent cell state never loses precision across rollout steps.
    """
    B, Cin, H, W = x.shape
    Cout = h_prev.shape[1]
    k = kernel_size
    p = k // 2
    C = Cin + Cout
    Hp = H + 2 * p
    HW = H * W
    N = 4 * Cout
    kC = k * C

    # --- interface glue: NCHW -> NHWC (required by the PyTorch interface) ---
    x_nhwc = jnp.transpose(x, (0, 2, 3, 1))
    h_nhwc = jnp.transpose(h_prev, (0, 2, 3, 1))
    xh = jnp.concatenate([x_nhwc, h_nhwc], axis=-1)               # (B, H, W, C)
    xh_p = jnp.pad(xh, ((0, 0), (p, p), (p, p), (0, 0)))          # (B, Hp, Wp, C)

    # Fold the kj width-shift taps into the channel (contraction) dim:
    # xs[b, h'*W + w, kj*C + c] = xh_p[b, h', w + kj, c].
    xs = jnp.concatenate([xh_p[:, :, kj:kj + W, :] for kj in range(k)], axis=-1)
    xs = xs.reshape(B, Hp * W, kC).astype(jnp.bfloat16)           # (B, Hp*W, kC)

    c_flat = jnp.transpose(c_prev, (0, 2, 3, 1)).reshape(B, HW, Cout)
    c_flat = c_flat.astype(jnp.float32)

    # OIHW (n, c, ki, kj) -> (ki, kj, c, n) -> (k, kj*C + c, n)  [kj-major,
    # matching the xs channel concatenation above].
    w_taps = jnp.transpose(weight_oihw, (2, 3, 1, 0)).reshape(k, kC, N)
    w_taps = w_taps.astype(jnp.bfloat16)
    b_mat = bias.reshape(1, N).astype(jnp.float32)

    # 64-row chunks keep the per-chunk f32 acc/gate slabs inside the vreg file.
    chunk = 64 if HW % 64 == 0 else HW

    kernel = functools.partial(_convlstm_kernel,
                               k=k, W=W, HW=HW, oc=Cout, chunk=chunk)

    out = pl.pallas_call(
        kernel,
        out_shape=jax.ShapeDtypeStruct((B, HW, 2 * Cout), jnp.float32),
        grid=(B,),
        in_specs=[
            pl.BlockSpec((None, Hp * W, kC), lambda b: (b, 0, 0)),
            pl.BlockSpec((k, kC, N), lambda b: (0, 0, 0)),        # resident
            pl.BlockSpec((1, N), lambda b: (0, 0)),               # resident
            pl.BlockSpec((None, HW, Cout), lambda b: (b, 0, 0)),
        ],
        out_specs=pl.BlockSpec((None, HW, 2 * Cout), lambda b: (b, 0, 0)),
        compiler_params=pltpu.CompilerParams(
            dimension_semantics=("parallel",)),
    )(xs, w_taps, b_mat, c_flat)

    # Single transpose + split (instead of two transposes) for the epilogue.
    out_nchw = jnp.transpose(out.reshape(B, H, W, 2 * Cout), (0, 3, 1, 2))
    y_hidden = out_nchw[:, :Cout].astype(x.dtype)
    y_cell = out_nchw[:, Cout:]                                   # f32 state
    return y_hidden, y_cell


def _reference_convlstm(x, h_prev, c_prev, weight_oihw, bias, kernel_size):
    """Pure-JAX reference reproducing the PyTorch module (NCHW, f32)."""
    p = kernel_size // 2
    xh = jnp.concatenate([x, h_prev], axis=1)
    gates = jax.lax.conv_general_dilated(
        xh, weight_oihw, window_strides=(1, 1),
        padding=((p, p), (p, p)),
        dimension_numbers=("NCHW", "OIHW", "NCHW"),
    ) + bias[None, :, None, None]
    g_in, g_f, g_o, g_c = jnp.split(gates, 4, axis=1)
    g_in = jax.nn.sigmoid(g_in)
    g_f = jax.nn.sigmoid(g_f)
    g_o = jax.nn.sigmoid(g_o)
    g_c = jnp.tanh(g_c)
    y_cell = g_f * c_prev + g_in * g_c
    y_hidden = g_o * jnp.tanh(y_cell)
    return y_hidden, y_cell


if __name__ == "__main__":
    # Module config: ConvLSTM(input_channels=4, output_channels=32, kernel_size=3)
    B, Cin, Cout, H, W, k = 2, 4, 32, 16, 16, 3

    key = jax.random.PRNGKey(0)
    kx, kh, kc, kw, kb = jax.random.split(key, 5)

    x = jax.random.normal(kx, (B, Cin, H, W), dtype=jnp.float32)
    h_prev = jax.random.normal(kh, (B, Cout, H, W), dtype=jnp.float32)
    c_prev = jax.random.normal(kc, (B, Cout, H, W), dtype=jnp.float32)

    # Deterministic synthetic parameters (shapes from nn.Conv2d(Cin+Cout, 4*Cout, k)).
    fan_in = (Cin + Cout) * k * k
    weight = jax.random.normal(kw, (4 * Cout, Cin + Cout, k, k), dtype=jnp.float32)
    weight = weight * (1.0 / jnp.sqrt(fan_in))
    bias = jax.random.normal(kb, (4 * Cout,), dtype=jnp.float32) * 0.1

    y_h, y_c = conv_lstm_forward(x, h_prev, c_prev, weight, bias, kernel_size=k)
    jax.block_until_ready((y_h, y_c))

    # Correctness check against a pure-JAX f32 reference of the PyTorch forward.
    # Tolerance loosened because the kernel's matmul inputs are bf16 (f32 accum).
    ref_h, ref_c = _reference_convlstm(x, h_prev, c_prev, weight, bias, k)
    assert jnp.allclose(y_h, ref_h, atol=5e-2, rtol=5e-2)
    assert jnp.allclose(y_c, ref_c, atol=5e-2, rtol=5e-2)

    print("KERNEL_OK")
</pallas_src>

<mosaic_0001>
module attributes {stable_mosaic.version = 11 : i64} {
  func.func @_convlstm_kernel(%arg0: i32, %arg1: memref<1x288x108xbf16, #tpu.memory_space<vmem>>, %arg2: memref<3x108x128xbf16, #tpu.memory_space<vmem>>, %arg3: memref<1x128xf32, #tpu.memory_space<vmem>>, %arg4: memref<1x256x32xf32, #tpu.memory_space<vmem>>, %arg5: memref<1x256x64xf32, #tpu.memory_space<vmem>>) attributes {dimension_semantics = [#tpu.dimension_semantics<parallel>], iteration_bounds = array<i64: 2>, scalar_prefetch = 0 : i64, scratch_operands = 0 : i64, tpu.core_type = #tpu.core_type<tc>, window_params = [{transform_indices = @transform_0, window_bounds = array<i64: 1, 288, 108>}, {pipeline_mode = #tpu.pipeline_mode<synchronous>, transform_indices = @transform_1, window_bounds = array<i64: 3, 108, 128>}, {pipeline_mode = #tpu.pipeline_mode<synchronous>, transform_indices = @transform_2, window_bounds = array<i64: 1, 128>}, {transform_indices = @transform_3, window_bounds = array<i64: 1, 256, 32>}, {transform_indices = @transform_4, window_bounds = array<i64: 1, 256, 64>}]} {
    %c0 = arith.constant 0 : index
    %c0_0 = arith.constant 0 : index
    %0 = vector.load %arg3[%c0, %c0_0] : memref<1x128xf32, #tpu.memory_space<vmem>>, vector<1x128xf32>
    %c0_i32 = arith.constant 0 : i32
    %c4_i32 = arith.constant 4 : i32
    %1 = arith.addi %c0_i32, %c4_i32 : i32
    %c1_i32 = arith.constant 1 : i32
    scf.for %arg6 = %c0_i32 to %1 step %c1_i32  : i32 {
      %c64_i32 = arith.constant 64 : i32
      %2 = arith.muli %arg6, %c64_i32 : i32
      %cst = arith.constant 0.000000e+00 : f32
      %3 = vector.broadcast %cst : f32 to vector<64x128xf32>
      %c0_i32_2 = arith.constant 0 : i32
      %4 = arith.addi %2, %c0_i32_2 : i32
      %5 = tpu.assume_multiple %4, 8 : i32
      %c0_3 = arith.constant 0 : index
      %6 = arith.index_cast %5 : i32 to index
      %c0_4 = arith.constant 0 : index
      %7 = vector.load %arg1[%c0_3, %6, %c0_4] : memref<1x288x108xbf16, #tpu.memory_space<vmem>>, vector<1x64x108xbf16>
      %8 = vector.shape_cast %7 : vector<1x64x108xbf16> to vector<64x108xbf16>
      %c0_5 = arith.constant 0 : index
      %c0_6 = arith.constant 0 : index
      %c0_7 = arith.constant 0 : index
      %9 = vector.load %arg2[%c0_5, %c0_6, %c0_7] : memref<3x108x128xbf16, #tpu.memory_space<vmem>>, vector<1x108x128xbf16>
      %10 = vector.shape_cast %9 : vector<1x108x128xbf16> to vector<108x128xbf16>
      %cst_8 = arith.constant dense<0.000000e+00> : vector<64x128xf32>
      %11 = tpu.matmul %8, %10, %cst_8 {dimension_numbers = #tpu.dot_dimension_numbers<[1], [0], [0], [1], [0, 0, 1, 1], [], []>} : vector<64x108xbf16>, vector<108x128xbf16>, vector<64x128xf32> -> vector<64x128xf32>
      %12 = arith.addf %3, %11 : vector<64x128xf32>
      %c16_i32 = arith.constant 16 : i32
      %13 = arith.addi %2, %c16_i32 : i32
      %14 = tpu.assume_multiple %13, 8 : i32
      %c0_9 = arith.constant 0 : index
      %15 = arith.index_cast %14 : i32 to index
      %c0_10 = arith.constant 0 : index
      %16 = vector.load %arg1[%c0_9, %15, %c0_10] : memref<1x288x108xbf16, #tpu.memory_space<vmem>>, vector<1x64x108xbf16>
      %17 = vector.shape_cast %16 : vector<1x64x108xbf16> to vector<64x108xbf16>
      %c1 = arith.constant 1 : index
      %c0_11 = arith.constant 0 : index
      %c0_12 = arith.constant 0 : index
      %18 = vector.load %arg2[%c1, %c0_11, %c0_12] : memref<3x108x128xbf16, #tpu.memory_space<vmem>>, vector<1x108x128xbf16>
      %19 = vector.shape_cast %18 : vector<1x108x128xbf16> to vector<108x128xbf16>
      %cst_13 = arith.constant dense<0.000000e+00> : vector<64x128xf32>
      %20 = tpu.matmul %17, %19, %cst_13 {dimension_numbers = #tpu.dot_dimension_numbers<[1], [0], [0], [1], [0, 0, 1, 1], [], []>} : vector<64x108xbf16>, vector<108x128xbf16>, vector<64x128xf32> -> vector<64x128xf32>
      %21 = arith.addf %12, %20 : vector<64x128xf32>
      %c32_i32 = arith.constant 32 : i32
      %22 = arith.addi %2, %c32_i32 : i32
      %23 = tpu.assume_multiple %22, 8 : i32
      %c0_14 = arith.constant 0 : index
      %24 = arith.index_cast %23 : i32 to index
      %c0_15 = arith.constant 0 : index
      %25 = vector.load %arg1[%c0_14, %24, %c0_15] : memref<1x288x108xbf16, #tpu.memory_space<vmem>>, vector<1x64x108xbf16>
      %26 = vector.shape_cast %25 : vector<1x64x108xbf16> to vector<64x108xbf16>
      %c2 = arith.constant 2 : index
      %c0_16 = arith.constant 0 : index
      %c0_17 = arith.constant 0 : index
      %27 = vector.load %arg2[%c2, %c0_16, %c0_17] : memref<3x108x128xbf16, #tpu.memory_space<vmem>>, vector<1x108x128xbf16>
      %28 = vector.shape_cast %27 : vector<1x108x128xbf16> to vector<108x128xbf16>
      %cst_18 = arith.constant dense<0.000000e+00> : vector<64x128xf32>
      %29 = tpu.matmul %26, %28, %cst_18 {dimension_numbers = #tpu.dot_dimension_numbers<[1], [0], [0], [1], [0, 0, 1, 1], [], []>} : vector<64x108xbf16>, vector<108x128xbf16>, vector<64x128xf32> -> vector<64x128xf32>
      %30 = arith.addf %21, %29 : vector<64x128xf32>
      %31 = vector.broadcast %0 : vector<1x128xf32> to vector<64x128xf32>
      %32 = arith.addf %30, %31 : vector<64x128xf32>
      %33 = vector.extract_strided_slice %32 {offsets = [0, 0], sizes = [64, 96], strides = [1, 1]} : vector<64x128xf32> to vector<64x96xf32>
      %34 = arith.negf %33 : vector<64x96xf32>
      %35 = math.exp %34 : vector<64x96xf32>
      %cst_19 = arith.constant 1.000000e+00 : f32
      %36 = vector.broadcast %cst_19 : f32 to vector<64x96xf32>
      %37 = arith.addf %36, %35 : vector<64x96xf32>
      %38 = arith.divf %36, %37 : vector<64x96xf32>
      %39 = vector.extract_strided_slice %32 {offsets = [0, 96], sizes = [64, 32], strides = [1, 1]} : vector<64x128xf32> to vector<64x32xf32>
      %40 = math.tanh %39 : vector<64x32xf32>
      %41 = vector.extract_strided_slice %38 {offsets = [0, 0], sizes = [64, 32], strides = [1, 1]} : vector<64x96xf32> to vector<64x32xf32>
      %42 = vector.extract_strided_slice %38 {offsets = [0, 32], sizes = [64, 32], strides = [1, 1]} : vector<64x96xf32> to vector<64x32xf32>
      %43 = vector.extract_strided_slice %38 {offsets = [0, 64], sizes = [64, 32], strides = [1, 1]} : vector<64x96xf32> to vector<64x32xf32>
      %44 = tpu.assume_multiple %2, 8 : i32
      %c0_20 = arith.constant 0 : index
      %45 = arith.index_cast %44 : i32 to index
      %c0_21 = arith.constant 0 : index
      %46 = vector.load %arg4[%c0_20, %45, %c0_21] : memref<1x256x32xf32, #tpu.memory_space<vmem>>, vector<1x64x32xf32>
      %47 = vector.shape_cast %46 : vector<1x64x32xf32> to vector<64x32xf32>
      %48 = arith.mulf %42, %47 : vector<64x32xf32>
      %49 = arith.mulf %41, %40 : vector<64x32xf32>
      %50 = arith.addf %48, %49 : vector<64x32xf32>
      %51 = math.tanh %50 : vector<64x32xf32>
      %52 = arith.mulf %43, %51 : vector<64x32xf32>
      %c0_22 = arith.constant 0 : index
      %53 = arith.index_cast %44 : i32 to index
      %c0_23 = arith.constant 0 : index
      %54 = vector.load %arg5[%c0_22, %53, %c0_23] : memref<1x256x64xf32, #tpu.memory_space<vmem>>, vector<1x64x32xf32>
      %55 = vector.shape_cast %54 : vector<1x64x32xf32> to vector<64x32xf32>
      %56 = vector.shape_cast %52 : vector<64x32xf32> to vector<1x64x32xf32>
      tpu.vector_store %arg5[%c0_22, %53, %c0_23], %56 {strides = array<i32>} : memref<1x256x64xf32, #tpu.memory_space<vmem>>, vector<1x64x32xf32>,
      %c0_24 = arith.constant 0 : index
      %57 = arith.index_cast %44 : i32 to index
      %c32 = arith.constant 32 : index
      %58 = vector.load %arg5[%c0_24, %57, %c32] : memref<1x256x64xf32, #tpu.memory_space<vmem>>, vector<1x64x32xf32>
      %59 = vector.shape_cast %58 : vector<1x64x32xf32> to vector<64x32xf32>
      %60 = vector.shape_cast %50 : vector<64x32xf32> to vector<1x64x32xf32>
      tpu.vector_store %arg5[%c0_24, %57, %c32], %60 {strides = array<i32>} : memref<1x256x64xf32, #tpu.memory_space<vmem>>, vector<1x64x32xf32>,
    }
    %c4_i32_1 = arith.constant 4 : i32
    return
  }
  func.func @transform_0(%arg0: i32) -> (i32, i32, i32) {
    %c0_i32 = arith.constant 0 : i32
    %c0_i32_0 = arith.constant 0 : i32
    %c0_i32_1 = arith.constant 0 : i32
    return %arg0, %c0_i32, %c0_i32_0 : i32, i32, i32
  }
  func.func @transform_1(%arg0: i32) -> (i32, i32, i32) {
    %c0_i32 = arith.constant 0 : i32
    %c0_i32_0 = arith.constant 0 : i32
    %c0_i32_1 = arith.constant 0 : i32
    %c0_i32_2 = arith.constant 0 : i32
    return %c0_i32, %c0_i32_0, %c0_i32_1 : i32, i32, i32
  }
  func.func @transform_2(%arg0: i32) -> (i32, i32) {
    %c0_i32 = arith.constant 0 : i32
    %c0_i32_0 = arith.constant 0 : i32
    %c0_i32_1 = arith.constant 0 : i32
    return %c0_i32, %c0_i32_0 : i32, i32
  }
  func.func @transform_3(%arg0: i32) -> (i32, i32, i32) {
    %c0_i32 = arith.constant 0 : i32
    %c0_i32_0 = arith.constant 0 : i32
    %c0_i32_1 = arith.constant 0 : i32
    return %arg0, %c0_i32, %c0_i32_0 : i32, i32, i32
  }
  func.func @transform_4(%arg0: i32) -> (i32, i32, i32) {
    %c0_i32 = arith.constant 0 : i32
    %c0_i32_0 = arith.constant 0 : i32
    %c0_i32_1 = arith.constant 0 : i32
    return %arg0, %c0_i32, %c0_i32_0 : i32, i32, i32
  }
}

</mosaic_0001>

<llo_original>
// kernel: conv_lstm_forward.1
$region0: #{conv_lstm_forward.1}
  #allocation0 [shape = 'u32[]', space=smem, size = 0x4, offset = 0x4, fixed_abs, tag = 'smem constant byte address 0x4 - core index']
  #allocation1 [shape = 'u32[72,128]{1,0:T(1,128)}', space=vmem, size = 0x9000, scoped, tag = 'internal scratch']
  %s0 = inlined_call_operand.vmem [shape: bf16[2,288,108], index: 0, kind: input, shape index: {}]
  %s1 = inlined_call_operand.vmem [shape: bf16[3,108,128], index: 1, kind: input, shape index: {}]
  %s2 = inlined_call_operand.vmem [shape: f32[1,128], index: 2, kind: input, shape index: {}]
  %s3 = inlined_call_operand.vmem [shape: f32[2,256,32], index: 3, kind: input, shape index: {}]
  %s4 = inlined_call_operand.vmem [shape: f32[2,256,64], index: 4, kind: output, shape index: {}]
  %s5 = sld [smem:[#allocation0]]
  $region56: #{conv_lstm_forward.1} parent=0
    _
  %s7 = ssub.s32 1, %s5
  %s8 = scalar_select 0, %s7, %s5
  loop: start=0, step=1, limit=4
  $region2: #{conv_lstm_forward.1} parent=0 // loop_pre_header
    _
  $region3: #{conv_lstm_forward.1} parent=0 // loop_header
    %s10 = sphi 0, %s14
    %p11 = scmp.ge.s32.totalorder %s10, 4
    %s20 = sphi 0, %s22
    %s23 = sphi 0, %s20
    %s24 = sphi 0, %s23
    %s40 = sphi 0, %s24
    %s44 = sphi 0, %s44
    %s46 = sphi 0, %s44
    %s47 = sphi 0, %s46
    %s61 = sphi 0, %s47
    %s65 = sphi 0, %s65
    %s67 = sphi 0, %s65
    %s68 = sphi 0, %s67
    %s82 = sphi 0, %s68
    %s88 = sphi 0, %s90
    %s91 = sphi 0, %s88
    %s92 = sphi 0, %s91
    %s108 = sphi 0, %s92
    %s114 = sphi 0, %s116
    %s117 = sphi 0, %s114
    %s118 = sphi 0, %s117
    %s134 = sphi 0, %s118
  $region4: #{conv_lstm_forward.1} parent=0 // loop_header_branch
    %13 = sbr.rel (%p11) target = $region8
  $region5: #{conv_lstm_forward.1} parent=0 // loop_body
    %s15 = ssub.s32 %s10, 1
    %s16 = ssub.s32 %s10, 2
    %s17 = sadd.s32 %s10, 1
    %s18 = ssub.s32 %s10, %s17
    %p19 = scmp.eq.s32.totalorder %s18, 0
    %s21 = sadd.s32 %s20, 1
    %s22 = scalar_select %p19, %s20, %s21
    %p25 = pneg %p19
    %p26 = scmp.eq.s32.totalorder %s10, 1
    %p27 = por %p25, %p26
    %p28 = scmp.ne.s32.totalorder %s20, %s23
    %p29 = scmp.eq.s32.totalorder %s10, 0
    %p30 = por %p28, %p29
    %p31 = scmp.ne.s32.totalorder %s20, %s23
    %p32 = scmp.eq.s32.totalorder %s15, 1
    %p33 = por %p31, %p32
    %p34 = scmp.ne.s32.totalorder %s23, %s24
    %p35 = scmp.eq.s32.totalorder %s15, 0
    %p36 = por %p34, %p35
    %p37 = scmp.ne.s32.totalorder %s23, %s24
    %p38 = scmp.eq.s32.totalorder %s16, 1
    %p39 = por %p37, %p38
    %p41 = scmp.ne.s32.totalorder %s24, %s40
    %p42 = scmp.eq.s32.totalorder %s16, 0
    %p43 = por %p41, %p42
    %s45 = sadd.s32 %s44, 1
    %p48 = scmp.eq.s32.totalorder %s10, 1
    %p49 = scmp.ne.s32.totalorder %s44, %s46
    %p50 = scmp.eq.s32.totalorder %s10, 0
    %p51 = por %p49, %p50
    %p52 = scmp.ne.s32.totalorder %s44, %s46
    %p53 = scmp.eq.s32.totalorder %s15, 1
    %p54 = por %p52, %p53
    %p55 = scmp.ne.s32.totalorder %s46, %s47
    %p56 = scmp.eq.s32.totalorder %s15, 0
    %p57 = por %p55, %p56
    %p58 = scmp.ne.s32.totalorder %s46, %s47
    %p59 = scmp.eq.s32.totalorder %s16, 1
    %p60 = por %p58, %p59
    %p62 = scmp.ne.s32.totalorder %s47, %s61
    %p63 = scmp.eq.s32.totalorder %s16, 0
    %p64 = por %p62, %p63
    %s66 = sadd.s32 %s65, 1
    %p69 = scmp.eq.s32.totalorder %s10, 1
    %p70 = scmp.ne.s32.totalorder %s65, %s67
    %p71 = scmp.eq.s32.totalorder %s10, 0
    %p72 = por %p70, %p71
    %p73 = scmp.ne.s32.totalorder %s65, %s67
    %p74 = scmp.eq.s32.totalorder %s15, 1
    %p75 = por %p73, %p74
    %p76 = scmp.ne.s32.totalorder %s67, %s68
    %p77 = scmp.eq.s32.totalorder %s15, 0
    %p78 = por %p76, %p77
    %p79 = scmp.ne.s32.totalorder %s67, %s68
    %p80 = scmp.eq.s32.totalorder %s16, 1
    %p81 = por %p79, %p80
    %p83 = scmp.ne.s32.totalorder %s68, %s82
    %p84 = scmp.eq.s32.totalorder %s16, 0
    %p85 = por %p83, %p84
    %s86 = ssub.s32 %s10, %s17
    %p87 = scmp.eq.s32.totalorder %s86, 0
    %s89 = sadd.s32 %s88, 1
    %s90 = scalar_select %p87, %s88, %s89
    %p93 = pneg %p87
    %p94 = scmp.eq.s32.totalorder %s10, 1
    %p95 = por %p93, %p94
    %p96 = scmp.ne.s32.totalorder %s88, %s91
    %p97 = scmp.eq.s32.totalorder %s10, 0
    %p98 = por %p96, %p97
    %p99 = scmp.ne.s32.totalorder %s88, %s91
    %p100 = scmp.eq.s32.totalorder %s15, 1
    %p101 = por %p99, %p100
    %p102 = scmp.ne.s32.totalorder %s91, %s92
    %p103 = scmp.eq.s32.totalorder %s15, 0
    %p104 = por %p102, %p103
    %p105 = scmp.ne.s32.totalorder %s91, %s92
    %p106 = scmp.eq.s32.totalorder %s16, 1
    %p107 = por %p105, %p106
    %p109 = scmp.ne.s32.totalorder %s92, %s108
    %p110 = scmp.eq.s32.totalorder %s16, 0
    %p111 = por %p109, %p110
    %s112 = ssub.s32 %s10, %s17
    %p113 = scmp.eq.s32.totalorder %s112, 0
    %s115 = sadd.s32 %s114, 1
    %s116 = scalar_select %p113, %s114, %s115
    %p119 = pneg %p113
    %p120 = scmp.eq.s32.totalorder %s10, 1
    %p121 = por %p119, %p120
    %p122 = scmp.ne.s32.totalorder %s114, %s117
    %p123 = scmp.eq.s32.totalorder %s10, 0
    %p124 = por %p122, %p123
    %p125 = scmp.ne.s32.totalorder %s114, %s117
    %p126 = scmp.eq.s32.totalorder %s15, 1
    %p127 = por %p125, %p126
    %p128 = scmp.ne.s32.totalorder %s117, %s118
    %p129 = scmp.eq.s32.totalorder %s15, 0
    %p130 = por %p128, %p129
    %p131 = scmp.ne.s32.totalorder %s117, %s118
    %p132 = scmp.eq.s32.totalorder %s16, 1
    %p133 = por %p131, %p132
    %p135 = scmp.ne.s32.totalorder %s118, %s134
    %p136 = scmp.eq.s32.totalorder %s16, 0
    %p137 = por %p135, %p136
    %p138 = scmp.le.s32.totalorder 1, %s10
    %p139 = scmp.lt.s32.totalorder %s10, 3
    %p140 = pnand %p138, %p139
    %p141 = pneg %p140
    // Predicated region
    $region9: #{conv_lstm_forward.1} parent=5 // pred_check
      _
    $region10: #{conv_lstm_forward.1} parent=5 // pred_check_branch
      %143 = sbr.rel (%p140) target = $region12
    $region11: #{conv_lstm_forward.1} parent=5 // pred_region
      %s144 = ssub.s32 %s10, 1
      // Predicated region
      $region13: #{conv_lstm_forward.1} parent=11 // pred_check
        %p145 = pneg %p57
      $region14: #{conv_lstm_forward.1} parent=11 // pred_check_branch
        %147 = sbr.rel (%p145) target = $region16
      $region15: #{conv_lstm_forward.1} parent=11 // pred_region
        _
      $region16: #{conv_lstm_forward.1} parent=11 // pred_fallthru
        _
      // Predicated region
      $region17: #{conv_lstm_forward.1} parent=11 // pred_check
        %p148 = pneg %p78
      $region18: #{conv_lstm_forward.1} parent=11 // pred_check_branch
        %150 = sbr.rel (%p148) target = $region20
      $region19: #{conv_lstm_forward.1} parent=11 // pred_region
        _
      $region20: #{conv_lstm_forward.1} parent=11 // pred_fallthru
        _
    $region12: #{conv_lstm_forward.1} parent=5 // pred_fallthru
      _
    %p151 = scmp.lt.s32.totalorder %s10, 2
    // Predicated region
    $region21: #{conv_lstm_forward.1} parent=5 // pred_check
      %p152 = pneg %p151
    $region22: #{conv_lstm_forward.1} parent=5 // pred_check_branch
      %154 = sbr.rel (%p152) target = $region24
    $region23: #{conv_lstm_forward.1} parent=5 // pred_region
      // Predicated region
      $region25: #{conv_lstm_forward.1} parent=23 // pred_check
        %p155 = pneg %p30
      $region26: #{conv_lstm_forward.1} parent=23 // pred_check_branch
        %157 = sbr.rel (%p155) target = $region28
      $region27: #{conv_lstm_forward.1} parent=23 // pred_region
        %p158 = scmp.lt.s32.totalorder %s10, 1
        %s159 = scalar_select %p158, %s10, 1
        %s160 = smul.addr %s159, 36
        %s161 = smul.addr %s160, 4
        %s162 = scalar_lea.vmem %s0, %s161
      $region28: #{conv_lstm_forward.1} parent=23 // pred_fallthru
        _
      // Predicated region
      $region29: #{conv_lstm_forward.1} parent=23 // pred_check
        %p163 = pneg %p98
      $region30: #{conv_lstm_forward.1} parent=23 // pred_check_branch
        %165 = sbr.rel (%p163) target = $region32
      $region31: #{conv_lstm_forward.1} parent=23 // pred_region
        %p166 = scmp.lt.s32.totalorder %s10, 1
        %s167 = scalar_select %p166, %s10, 1
        %s168 = smul.addr %s167, 32
        %s169 = smul.addr %s168, 8
        %s170 = scalar_lea.vmem %s3, %s169
      $region32: #{conv_lstm_forward.1} parent=23 // pred_fallthru
        _
    $region24: #{conv_lstm_forward.1} parent=5 // pred_fallthru
      _
    %p171 = scmp.le.s32.totalorder 1, %s10
    %p172 = scmp.lt.s32.totalorder %s10, 3
    %p173 = pnand %p171, %p172
    %p174 = pneg %p173
    // Predicated region
    $region33: #{conv_lstm_forward.1} parent=5 // pred_check
      _
    $region34: #{conv_lstm_forward.1} parent=5 // pred_check_branch
      %176 = sbr.rel (%p173) target = $region36
    $region35: #{conv_lstm_forward.1} parent=5 // pred_region
      %s177 = ssub.s32 %s10, 1
      %p178 = scmp.lt.s32.totalorder %s15, 1
      %s179 = scalar_select %p178, %s15, 1
      %s180 = smul.addr %s179, 36
      %s181 = smul.addr %s180, 4
      %s182 = scalar_lea.vmem %s0, %s181
      %p183 = pneg %p36
      %p184 = pneg %p33
      %p185 = pneg %p57
      %p186 = pneg %p54
      %p187 = pneg %p78
      %p188 = pneg %p75
      %p189 = scmp.lt.s32.totalorder %s15, 1
      %s190 = scalar_select %p189, %s15, 1
      %s191 = smul.addr %s190, 32
      %s192 = smul.addr %s191, 8
      %s193 = scalar_lea.vmem %s3, %s192
      %p194 = pneg %p104
      %p195 = pneg %p101
      %p196 = pneg %p130
      %p197 = pneg %p127
      %p198 = scmp.lt.s32.totalorder %s15, 1
      %s199 = scalar_select %p198, %s15, 1
      %s200 = smul.addr %s199, 32
      %s201 = smul.addr %s200, 8
      %s202 = scalar_lea.vmem %s4, %s201
      %p203 = scmp.lt.s32.totalorder %s15, 1
      %s204 = scalar_select %p203, %s15, 1
      %s205 = smul.addr %s204, 36
      %s206 = smul.addr %s205, 4
      %s207 = scalar_lea.vmem %s0, %s206
      %p208 = scmp.lt.s32.totalorder %s15, 1
      %s209 = scalar_select %p208, %s15, 1
      %s210 = smul.addr %s209, 32
      %s211 = smul.addr %s210, 8
      %s212 = scalar_lea.vmem %s3, %s211
      %p213 = scmp.lt.s32.totalorder %s15, 1
      %s214 = scalar_select %p213, %s15, 1
      %s215 = smul.addr %s214, 32
      %s216 = smul.addr %s215, 8
      %s217 = scalar_lea.vmem %s4, %s216
      %v219 = vld [vmem:[%s2] sm:$0x1]
      loop: start=0, step=1, limit=4
      $region37: #{conv_lstm_forward.1} parent=35 // loop_pre_header
        _
      $region38: #{conv_lstm_forward.1} parent=35 // loop_header
        %s221 = sphi 0, %s225
        %p222 = scmp.ge.s32.totalorder %s221, 4
      $region39: #{conv_lstm_forward.1} parent=35 // loop_header_branch
        %224 = sbr.rel (%p222) target = $region43
      $region40: #{conv_lstm_forward.1} parent=35 // loop_body
        %s226 = smul.u32 %s221, 64
        %s227 = sshra.s32 %s226, 3
        %s228 = sand.u32 %s226, 7
        %s229 = smul.addr %s227, 4
        %s230 = scalar_lea.vmem %s207, %s229
        %v231 = vld [vmem:[%s230] sm:$0xf]
        %v232 = vld [vmem:[%s230 + $0x4] sm:$0xf]
        %v233 = vld [vmem:[%s230 + $0x8] sm:$0xf]
        %v234 = vld [vmem:[%s230 + $0xc] sm:$0xf]
        %v235 = vld [vmem:[%s230 + $0x10] sm:$0xf]
        %v236 = vld [vmem:[%s230 + $0x14] sm:$0xf]
        %v237 = vld [vmem:[%s230 + $0x18] sm:$0xf]
        %v238 = vld [vmem:[%s230 + $0x1c] sm:$0xf]
        %v239 = vld [vmem:[%s1] sm:$0xf]
        %v240 = vld [vmem:[%s1 + $0x4] sm:$0xf]
        %v241 = vld [vmem:[%s1 + $0x8] sm:$0xf]
        %v242 = vld [vmem:[%s1 + $0xc] sm:$0xf]
        %v243 = vld [vmem:[%s1 + $0x10] sm:$0xf]
        %v244 = vld [vmem:[%s1 + $0x14] sm:$0xf]
        %v245 = vld [vmem:[%s1 + $0x18] sm:$0xf]
        %v246 = vld [vmem:[%s1 + $0x1c] sm:$0xf]
        %v247 = vld [vmem:[%s1 + $0x20] sm:$0xf]
        %v248 = vld [vmem:[%s1 + $0x24] sm:$0xf]
        %v249 = vld [vmem:[%s1 + $0x28] sm:$0xf]
        %v250 = vld [vmem:[%s1 + $0x2c] sm:$0xf]
        %v251 = vld [vmem:[%s1 + $0x30] sm:$0xf]
        %v252 = vld [vmem:[%s1 + $0x34] sm:$0x3]
        %s253 = sadd.s32 %s226, 16
        %s254 = sshra.s32 %s253, 3
        %s255 = sand.u32 %s253, 7
        %s256 = smul.addr %s254, 4
        %s257 = scalar_lea.vmem %s207, %s256
        %v258 = vld [vmem:[%s257] sm:$0xf]
        %v259 = vld [vmem:[%s257 + $0x4] sm:$0xf]
        %v260 = vld [vmem:[%s257 + $0x8] sm:$0xf]
        %v261 = vld [vmem:[%s257 + $0xc] sm:$0xf]
        %v262 = vld [vmem:[%s257 + $0x10] sm:$0xf]
        %v263 = vld [vmem:[%s257 + $0x14] sm:$0xf]
        %v264 = vld [vmem:[%s257 + $0x18] sm:$0xf]
        %v265 = vld [vmem:[%s257 + $0x1c] sm:$0xf]
        %s266 = scalar_lea.vmem %s1, 56
        %v267 = vld [vmem:[%s266] sm:$0xf]
        %v268 = vld [vmem:[%s266 + $0x4] sm:$0xf]
        %v269 = vld [vmem:[%s266 + $0x8] sm:$0xf]
        %v270 = vld [vmem:[%s266 + $0xc] sm:$0xf]
        %v271 = vld [vmem:[%s266 + $0x10] sm:$0xf]
        %v272 = vld [vmem:[%s266 + $0x14] sm:$0xf]
        %v273 = vld [vmem:[%s266 + $0x18] sm:$0xf]
        %v274 = vld [vmem:[%s266 + $0x1c] sm:$0xf]
        %v275 = vld [vmem:[%s266 + $0x20] sm:$0xf]
        %v276 = vld [vmem:[%s266 + $0x24] sm:$0xf]
        %v277 = vld [vmem:[%s266 + $0x28] sm:$0xf]
        %v278 = vld [vmem:[%s266 + $0x2c] sm:$0xf]
        %v279 = vld [vmem:[%s266 + $0x30] sm:$0xf]
        %v280 = vld [vmem:[%s266 + $0x34] sm:$0x3]
        %v289 = vunpack.c.l.b16 %v258
        %v290 = vunpack.c.l.b16 %v259
        %v291 = vunpack.c.l.b16 %v260
        %v292 = vunpack.c.l.b16 %v261
        %v293 = vunpack.c.l.b16 %v262
        %v294 = vunpack.c.l.b16 %v263
        %v295 = vunpack.c.l.b16 %v264
        %v296 = vunpack.c.l.b16 %v265
        %v297 = vpack.c.b16 %v290, %v289
        %v298 = vpack.c.b16 %v292, %v291
        %v299 = vpack.c.b16 %v294, %v293
        %v300 = vpack.c.b16 %v296, %v295
        %v315 = vunpack.c.l.b16 %v267
        %v316 = vunpack.c.l.b16 %v268
        %v317 = vunpack.c.l.b16 %v269
        %v318 = vunpack.c.l.b16 %v270
        %v319 = vunpack.c.l.b16 %v271
        %v320 = vunpack.c.l.b16 %v272
        %v321 = vunpack.c.l.b16 %v273
        %v322 = vunpack.c.l.b16 %v274
        %v323 = vunpack.c.l.b16 %v275
        %v324 = vunpack.c.l.b16 %v276
        %v325 = vunpack.c.l.b16 %v277
        %v326 = vunpack.c.l.b16 %v278
        %v327 = vunpack.c.l.b16 %v279
        %v328 = vunpack.c.l.b16 %v280
        %v329 = vpack.c.b16 %v316, %v315
        %v330 = vpack.c.b16 %v318, %v317
        %v331 = vpack.c.b16 %v320, %v319
        %v332 = vpack.c.b16 %v322, %v321
        %v333 = vpack.c.b16 %v324, %v323
        %v334 = vpack.c.b16 %v326, %v325
        %v335 = vpack.c.b16 %v328, %v327
        %vm342 = vcmask 883712
        %v344 = vsel %vm342, %v297, 0
        %v347 = vsel %vm342, %v298, 0
        %v350 = vsel %vm342, %v299, 0
        %v353 = vsel %vm342, %v300, 0
        %vm355 = vcmask 1045504
        %v357 = vsel %vm355, %v335, 0
        %359 = vmatpush.bf16.msra.mxu0 0
        %360 = vmatpush.bf16.msra.mxu0 %v357
        %361 = vmatpush.bf16.msra.mxu0 %v334
        %362 = vmatpush.bf16.msra.mxu0 %v333
        %363 = vmatpush.bf16.msra.mxu0 %v332
        %364 = vmatpush.bf16.msra.mxu0 %v331
        %365 = vmatpush.bf16.msra.mxu0 %v330
        %366 = vmatpush.bf16.msra.mxu0 %v329
        %367 = vmatmul.bf16.gmra.mxu0 %v344
        %v368 = vpop.f32.mrf.mxu0
        %v369 = vadd.f32 0.0, %v368
        %v370 = vpop.f32.mrf.mxu0
        %v371 = vadd.f32 0.0, %v370
        %372 = vmatmul.bf16.gmra.mxu0 %v347
        %v373 = vpop.f32.mrf.mxu0
        %v374 = vadd.f32 0.0, %v373
        %v375 = vpop.f32.mrf.mxu0
        %v376 = vadd.f32 0.0, %v375
        %377 = vmatmul.bf16.gmra.mxu0 %v350
        %v378 = vpop.f32.mrf.mxu0
        %v379 = vadd.f32 0.0, %v378
        %v380 = vpop.f32.mrf.mxu0
        %v381 = vadd.f32 0.0, %v380
        %382 = vmatmul.bf16.gmra.mxu0 %v353
        %v383 = vpop.f32.mrf.mxu0
        %v384 = vadd.f32 0.0, %v383
        %v385 = vpop.f32.mrf.mxu0
        %v386 = vadd.f32 0.0, %v385
        %387 = vdwg.mxu0
        %v396 = vunpack.c.l.b16 %v231
        %v397 = vunpack.c.l.b16 %v232
        %v398 = vunpack.c.l.b16 %v233
        %v399 = vunpack.c.l.b16 %v234
        %v400 = vunpack.c.l.b16 %v235
        %v401 = vunpack.c.l.b16 %v236
        %v402 = vunpack.c.l.b16 %v237
        %v403 = vunpack.c.l.b16 %v238
        %v404 = vpack.c.b16 %v397, %v396
        %v405 = vpack.c.b16 %v399, %v398
        %v406 = vpack.c.b16 %v401, %v400
        %v407 = vpack.c.b16 %v403, %v402
        %v422 = vunpack.c.l.b16 %v239
        %v423 = vunpack.c.l.b16 %v240
        %v424 = vunpack.c.l.b16 %v241
        %v425 = vunpack.c.l.b16 %v242
        %v426 = vunpack.c.l.b16 %v243
        %v427 = vunpack.c.l.b16 %v244
        %v428 = vunpack.c.l.b16 %v245
        %v429 = vunpack.c.l.b16 %v246
        %v430 = vunpack.c.l.b16 %v247
        %v431 = vunpack.c.l.b16 %v248
        %v432 = vunpack.c.l.b16 %v249
        %v433 = vunpack.c.l.b16 %v250
        %v434 = vunpack.c.l.b16 %v251
        %v435 = vunpack.c.l.b16 %v252
        %v436 = vpack.c.b16 %v423, %v422
        %v437 = vpack.c.b16 %v425, %v424
        %v438 = vpack.c.b16 %v427, %v426
        %v439 = vpack.c.b16 %v429, %v428
        %v440 = vpack.c.b16 %v431, %v430
        %v441 = vpack.c.b16 %v433, %v432
        %v442 = vpack.c.b16 %v435, %v434
        %v450 = vsel %vm342, %v404, 0
        %v453 = vsel %vm342, %v405, 0
        %v456 = vsel %vm342, %v406, 0
        %v459 = vsel %vm342, %v407, 0
        %v462 = vsel %vm355, %v442, 0
        %464 = vmatpush.bf16.msra.mxu0 0
        %465 = vmatpush.bf16.msra.mxu0 %v462
        %466 = vmatpush.bf16.msra.mxu0 %v441
        %467 = vmatpush.bf16.msra.mxu0 %v440
        %468 = vmatpush.bf16.msra.mxu0 %v439
        %469 = vmatpush.bf16.msra.mxu0 %v438
        %470 = vmatpush.bf16.msra.mxu0 %v437
        %471 = vmatpush.bf16.msra.mxu0 %v436
        %472 = vmatmul.bf16.gmra.mxu0 %v450
        %v473 = vpop.f32.mrf.mxu0
        %v474 = vadd.f32 %v369, %v473
        %v475 = vpop.f32.mrf.mxu0
        %v476 = vadd.f32 %v371, %v475
        %477 = vmatmul.bf16.gmra.mxu0 %v453
        %v478 = vpop.f32.mrf.mxu0
        %v479 = vadd.f32 %v374, %v478
        %v480 = vpop.f32.mrf.mxu0
        %v481 = vadd.f32 %v376, %v480
        %482 = vmatmul.bf16.gmra.mxu0 %v456
        %v483 = vpop.f32.mrf.mxu0
        %v484 = vadd.f32 %v379, %v483
        %v485 = vpop.f32.mrf.mxu0
        %v486 = vadd.f32 %v381, %v485
        %487 = vmatmul.bf16.gmra.mxu0 %v459
        %v488 = vpop.f32.mrf.mxu0
        %v489 = vadd.f32 %v384, %v488
        %v490 = vpop.f32.mrf.mxu0
        %v491 = vadd.f32 %v386, %v490
        %492 = vdwg.mxu0
        %s493 = sadd.s32 %s226, 32
        %s494 = sshra.s32 %s493, 3
        %s495 = sand.u32 %s493, 7
        %s496 = smul.addr %s494, 4
        %s497 = scalar_lea.vmem %s207, %s496
        %v498 = vld [vmem:[%s497] sm:$0xf]
        %v499 = vld [vmem:[%s497 + $0x4] sm:$0xf]
        %v500 = vld [vmem:[%s497 + $0x8] sm:$0xf]
        %v501 = vld [vmem:[%s497 + $0xc] sm:$0xf]
        %v502 = vld [vmem:[%s497 + $0x10] sm:$0xf]
        %v503 = vld [vmem:[%s497 + $0x14] sm:$0xf]
        %v504 = vld [vmem:[%s497 + $0x18] sm:$0xf]
        %v505 = vld [vmem:[%s497 + $0x1c] sm:$0xf]
        %s506 = scalar_lea.vmem %s1, 112
        %v507 = vld [vmem:[%s506] sm:$0xf]
        %v508 = vld [vmem:[%s506 + $0x4] sm:$0xf]
        %v509 = vld [vmem:[%s506 + $0x8] sm:$0xf]
        %v510 = vld [vmem:[%s506 + $0xc] sm:$0xf]
        %v511 = vld [vmem:[%s506 + $0x10] sm:$0xf]
        %v512 = vld [vmem:[%s506 + $0x14] sm:$0xf]
        %v513 = vld [vmem:[%s506 + $0x18] sm:$0xf]
        %v514 = vld [vmem:[%s506 + $0x1c] sm:$0xf]
        %v515 = vld [vmem:[%s506 + $0x20] sm:$0xf]
        %v516 = vld [vmem:[%s506 + $0x24] sm:$0xf]
        %v517 = vld [vmem:[%s506 + $0x28] sm:$0xf]
        %v518 = vld [vmem:[%s506 + $0x2c] sm:$0xf]
        %v519 = vld [vmem:[%s506 + $0x30] sm:$0xf]
        %v520 = vld [vmem:[%s506 + $0x34] sm:$0x3]
        %v529 = vunpack.c.l.b16 %v498
        %v530 = vunpack.c.l.b16 %v499
        %v531 = vunpack.c.l.b16 %v500
        %v532 = vunpack.c.l.b16 %v501
        %v533 = vunpack.c.l.b16 %v502
        %v534 = vunpack.c.l.b16 %v503
        %v535 = vunpack.c.l.b16 %v504
        %v536 = vunpack.c.l.b16 %v505
        %v537 = vpack.c.b16 %v530, %v529
        %v538 = vpack.c.b16 %v532, %v531
        %v539 = vpack.c.b16 %v534, %v533
        %v540 = vpack.c.b16 %v536, %v535
        %v555 = vunpack.c.l.b16 %v507
        %v556 = vunpack.c.l.b16 %v508
        %v557 = vunpack.c.l.b16 %v509
        %v558 = vunpack.c.l.b16 %v510
        %v559 = vunpack.c.l.b16 %v511
        %v560 = vunpack.c.l.b16 %v512
        %v561 = vunpack.c.l.b16 %v513
        %v562 = vunpack.c.l.b16 %v514
        %v563 = vunpack.c.l.b16 %v515
        %v564 = vunpack.c.l.b16 %v516
        %v565 = vunpack.c.l.b16 %v517
        %v566 = vunpack.c.l.b16 %v518
        %v567 = vunpack.c.l.b16 %v519
        %v568 = vunpack.c.l.b16 %v520
        %v569 = vpack.c.b16 %v556, %v555
        %v570 = vpack.c.b16 %v558, %v557
        %v571 = vpack.c.b16 %v560, %v559
        %v572 = vpack.c.b16 %v562, %v561
        %v573 = vpack.c.b16 %v564, %v563
        %v574 = vpack.c.b16 %v566, %v565
        %v575 = vpack.c.b16 %v568, %v567
        %v583 = vsel %vm342, %v537, 0
        %v586 = vsel %vm342, %v538, 0
        %v589 = vsel %vm342, %v539, 0
        %v592 = vsel %vm342, %v540, 0
        %v595 = vsel %vm355, %v575, 0
        %597 = vmatpush.bf16.msra.mxu0 0
        %598 = vmatpush.bf16.msra.mxu0 %v595
        %599 = vmatpush.bf16.msra.mxu0 %v574
        %600 = vmatpush.bf16.msra.mxu0 %v573
        %601 = vmatpush.bf16.msra.mxu0 %v572
        %602 = vmatpush.bf16.msra.mxu0 %v571
        %603 = vmatpush.bf16.msra.mxu0 %v570
        %604 = vmatpush.bf16.msra.mxu0 %v569
        %605 = vmatmul.bf16.gmra.mxu0 %v583
        %v606 = vpop.f32.mrf.mxu0
        %v607 = vadd.f32 0.0, %v606
        %v608 = vpop.f32.mrf.mxu0
        %v609 = vadd.f32 0.0, %v608
        %610 = vmatmul.bf16.gmra.mxu0 %v586
        %v611 = vpop.f32.mrf.mxu0
        %v612 = vadd.f32 0.0, %v611
        %v613 = vpop.f32.mrf.mxu0
        %v614 = vadd.f32 0.0, %v613
        %615 = vmatmul.bf16.gmra.mxu0 %v589
        %v616 = vpop.f32.mrf.mxu0
        %v617 = vadd.f32 0.0, %v616
        %v618 = vpop.f32.mrf.mxu0
        %v619 = vadd.f32 0.0, %v618
        %620 = vmatmul.bf16.gmra.mxu0 %v592
        %v621 = vpop.f32.mrf.mxu0
        %v622 = vadd.f32 0.0, %v621
        %v623 = vpop.f32.mrf.mxu0
        %v624 = vadd.f32 0.0, %v623
        %625 = vdwg.mxu0
        %v626 = vadd.f32 %v474, %v607
        %v627 = vadd.f32 %v476, %v609
        %v628 = vadd.f32 %v479, %v612
        %v629 = vadd.f32 %v481, %v614
        %v630 = vadd.f32 %v484, %v617
        %v631 = vadd.f32 %v486, %v619
        %v632 = vadd.f32 %v489, %v622
        %v633 = vadd.f32 %v491, %v624
        %v635 = vperm.slane %v219, 0
        %v637 = vadd.f32 %v626, %v635
        %v638 = vadd.f32 %v627, %v635
        %v639 = vadd.f32 %v628, %v635
        %v640 = vadd.f32 %v629, %v635
        %v641 = vadd.f32 %v630, %v635
        %v642 = vadd.f32 %v631, %v635
        %v643 = vadd.f32 %v632, %v635
        %v644 = vadd.f32 %v633, %v635
        %v645 = vxor.u32 %v637, 2147483648
        %v646 = vxor.u32 %v638, 2147483648
        %v647 = vxor.u32 %v639, 2147483648
        %v648 = vxor.u32 %v640, 2147483648
        %v649 = vxor.u32 %v641, 2147483648
        %v650 = vxor.u32 %v642, 2147483648
        %v651 = vxor.u32 %v643, 2147483648
        %v652 = vxor.u32 %v644, 2147483648
        %v653 = vmul.f32 %v645, 1.442695
        %v654 = vpow.pop %v653
        %v655 = vmul.f32 %v646, 1.442695
        %v656 = vpow.pop %v655
        %v657 = vmul.f32 %v647, 1.442695
        %v658 = vpow.pop %v657
        %v659 = vmul.f32 %v648, 1.442695
        %v660 = vpow.pop %v659
        %v661 = vmul.f32 %v649, 1.442695
        %v662 = vpow.pop %v661
        %v663 = vmul.f32 %v650, 1.442695
        %v664 = vpow.pop %v663
        %v665 = vmul.f32 %v651, 1.442695
        %v666 = vpow.pop %v665
        %v667 = vmul.f32 %v652, 1.442695
        %v668 = vpow.pop %v667
        %v669 = vadd.f32 %v654, 1.0
        %v670 = vadd.f32 %v656, 1.0
        %v671 = vadd.f32 %v658, 1.0
        %v672 = vadd.f32 %v660, 1.0
        %v673 = vadd.f32 %v662, 1.0
        %v674 = vadd.f32 %v664, 1.0
        %v675 = vadd.f32 %v666, 1.0
        %v676 = vadd.f32 %v668, 1.0
        %v677 = vrcp.pop %v669
        %v678 = vmul.f32 %v669, %v677
        %v679 = vsub.f32 1.0, %v678
        %v680 = vmul.f32 %v677, %v679
        %v681 = vadd.f32 %v677, %v680
        %vm682 = vweird.f32 %v669
        %vm683 = vweird.f32 %v677
        %vm684 = vmor %vm682, %vm683
        %v685 = vsel %vm684, %v677, %v681
        %v686 = vand.u32 2147483647, %v669
        %vm687 = vcmp.eq.f32.partialorder %v686, 8.507059e+37
        %v688 = vand.u32 %v669, 2147483648
        %v689 = vor.u32 1.1754944e-38, %v688
        %v690 = vsel %vm687, %v689, %v685
        %v691 = vmul.f32 1.0, %v690
        %v692 = vrcp.pop %v670
        %v693 = vmul.f32 %v670, %v692
        %v694 = vsub.f32 1.0, %v693
        %v695 = vmul.f32 %v692, %v694
        %v696 = vadd.f32 %v692, %v695
        %vm697 = vweird.f32 %v670
        %vm698 = vweird.f32 %v692
        %vm699 = vmor %vm697, %vm698
        %v700 = vsel %vm699, %v692, %v696
        %v701 = vand.u32 2147483647, %v670
        %vm702 = vcmp.eq.f32.partialorder %v701, 8.507059e+37
        %v703 = vand.u32 %v670, 2147483648
        %v704 = vor.u32 1.1754944e-38, %v703
        %v705 = vsel %vm702, %v704, %v700
        %v706 = vmul.f32 1.0, %v705
        %v707 = vrcp.pop %v671
        %v708 = vmul.f32 %v671, %v707
        %v709 = vsub.f32 1.0, %v708
        %v710 = vmul.f32 %v707, %v709
        %v711 = vadd.f32 %v707, %v710
        %vm712 = vweird.f32 %v671
        %vm713 = vweird.f32 %v707
        %vm714 = vmor %vm712, %vm713
        %v715 = vsel %vm714, %v707, %v711
        %v716 = vand.u32 2147483647, %v671
        %vm717 = vcmp.eq.f32.partialorder %v716, 8.507059e+37
        %v718 = vand.u32 %v671, 2147483648
        %v719 = vor.u32 1.1754944e-38, %v718
        %v720 = vsel %vm717, %v719, %v715
        %v721 = vmul.f32 1.0, %v720
        %v722 = vrcp.pop %v672
        %v723 = vmul.f32 %v672, %v722
        %v724 = vsub.f32 1.0, %v723
        %v725 = vmul.f32 %v722, %v724
        %v726 = vadd.f32 %v722, %v725
        %vm727 = vweird.f32 %v672
        %vm728 = vweird.f32 %v722
        %vm729 = vmor %vm727, %vm728
        %v730 = vsel %vm729, %v722, %v726
        %v731 = vand.u32 2147483647, %v672
        %vm732 = vcmp.eq.f32.partialorder %v731, 8.507059e+37
        %v733 = vand.u32 %v672, 2147483648
        %v734 = vor.u32 1.1754944e-38, %v733
        %v735 = vsel %vm732, %v734, %v730
        %v736 = vmul.f32 1.0, %v735
        %v737 = vrcp.pop %v673
        %v738 = vmul.f32 %v673, %v737
        %v739 = vsub.f32 1.0, %v738
        %v740 = vmul.f32 %v737, %v739
        %v741 = vadd.f32 %v737, %v740
        %vm742 = vweird.f32 %v673
        %vm743 = vweird.f32 %v737
        %vm744 = vmor %vm742, %vm743
        %v745 = vsel %vm744, %v737, %v741
        %v746 = vand.u32 2147483647, %v673
        %vm747 = vcmp.eq.f32.partialorder %v746, 8.507059e+37
        %v748 = vand.u32 %v673, 2147483648
        %v749 = vor.u32 1.1754944e-38, %v748
        %v750 = vsel %vm747, %v749, %v745
        %v751 = vmul.f32 1.0, %v750
        %v752 = vrcp.pop %v674
        %v753 = vmul.f32 %v674, %v752
        %v754 = vsub.f32 1.0, %v753
        %v755 = vmul.f32 %v752, %v754
        %v756 = vadd.f32 %v752, %v755
        %vm757 = vweird.f32 %v674
        %vm758 = vweird.f32 %v752
        %vm759 = vmor %vm757, %vm758
        %v760 = vsel %vm759, %v752, %v756
        %v761 = vand.u32 2147483647, %v674
        %vm762 = vcmp.eq.f32.partialorder %v761, 8.507059e+37
        %v763 = vand.u32 %v674, 2147483648
        %v764 = vor.u32 1.1754944e-38, %v763
        %v765 = vsel %vm762, %v764, %v760
        %v766 = vmul.f32 1.0, %v765
        %v767 = vrcp.pop %v675
        %v768 = vmul.f32 %v675, %v767
        %v769 = vsub.f32 1.0, %v768
        %v770 = vmul.f32 %v767, %v769
        %v771 = vadd.f32 %v767, %v770
        %vm772 = vweird.f32 %v675
        %vm773 = vweird.f32 %v767
        %vm774 = vmor %vm772, %vm773
        %v775 = vsel %vm774, %v767, %v771
        %v776 = vand.u32 2147483647, %v675
        %vm777 = vcmp.eq.f32.partialorder %v776, 8.507059e+37
        %v778 = vand.u32 %v675, 2147483648
        %v779 = vor.u32 1.1754944e-38, %v778
        %v780 = vsel %vm777, %v779, %v775
        %v781 = vmul.f32 1.0, %v780
        %v782 = vrcp.pop %v676
        %v783 = vmul.f32 %v676, %v782
        %v784 = vsub.f32 1.0, %v783
        %v785 = vmul.f32 %v782, %v784
        %v786 = vadd.f32 %v782, %v785
        %vm787 = vweird.f32 %v676
        %vm788 = vweird.f32 %v782
        %vm789 = vmor %vm787, %vm788
        %v790 = vsel %vm789, %v782, %v786
        %v791 = vand.u32 2147483647, %v676
        %vm792 = vcmp.eq.f32.partialorder %v791, 8.507059e+37
        %v793 = vand.u32 %v676, 2147483648
        %v794 = vor.u32 1.1754944e-38, %v793
        %v795 = vsel %vm792, %v794, %v790
        %v796 = vmul.f32 1.0, %v795
        %v797 = vtanh.pop %v637
        %v798 = vtanh.pop %v638
        %v799 = vtanh.pop %v639
        %v800 = vtanh.pop %v640
        %v801 = vtanh.pop %v641
        %v802 = vtanh.pop %v642
        %v803 = vtanh.pop %v643
        %v804 = vtanh.pop %v644
        %s805 = scalar_lea.vmem %s212, %s226
        %v806 = vld [vmem:[%s805] sm:$0xff]
        %v807 = vld [vmem:[%s805 + $0x8] sm:$0xff]
        %v808 = vld [vmem:[%s805 + $0x10] sm:$0xff]
        %v809 = vld [vmem:[%s805 + $0x18] sm:$0xff]
        %v810 = vld [vmem:[%s805 + $0x20] sm:$0xff]
        %v811 = vld [vmem:[%s805 + $0x28] sm:$0xff]
        %v812 = vld [vmem:[%s805 + $0x30] sm:$0xff]
        %v813 = vld [vmem:[%s805 + $0x38] sm:$0xff]
        %822 = vrot.lane.b32.xlu0 %v806, 32
        %v823 = vpop.permute.xlu0 %822
        %824 = vrot.lane.b32.xlu0 %v807, 32
        %v825 = vpop.permute.xlu0 %824
        %826 = vrot.lane.b32.xlu0 %v808, 32
        %v827 = vpop.permute.xlu0 %826
        %828 = vrot.lane.b32.xlu0 %v809, 32
        %v829 = vpop.permute.xlu0 %828
        %830 = vrot.lane.b32.xlu0 %v810, 32
        %v831 = vpop.permute.xlu0 %830
        %832 = vrot.lane.b32.xlu0 %v811, 32
        %v833 = vpop.permute.xlu0 %832
        %834 = vrot.lane.b32.xlu0 %v812, 32
        %v835 = vpop.permute.xlu0 %834
        %836 = vrot.lane.b32.xlu0 %v813, 32
        %v837 = vpop.permute.xlu0 %836
        %v846 = vmul.f32 %v691, %v823
        %v847 = vmul.f32 %v706, %v825
        %v848 = vmul.f32 %v721, %v827
        %v849 = vmul.f32 %v736, %v829
        %v850 = vmul.f32 %v751, %v831
        %v851 = vmul.f32 %v766, %v833
        %v852 = vmul.f32 %v781, %v835
        %v853 = vmul.f32 %v796, %v837
        %862 = vrot.lane.b32.xlu0 %v797, 32
        %v863 = vpop.permute.xlu0 %862
        %864 = vrot.lane.b32.xlu0 %v798, 32
        %v865 = vpop.permute.xlu0 %864
        %866 = vrot.lane.b32.xlu0 %v799, 32
        %v867 = vpop.permute.xlu0 %866
        %868 = vrot.lane.b32.xlu0 %v800, 32
        %v869 = vpop.permute.xlu0 %868
        %870 = vrot.lane.b32.xlu0 %v801, 32
        %v871 = vpop.permute.xlu0 %870
        %872 = vrot.lane.b32.xlu0 %v802, 32
        %v873 = vpop.permute.xlu0 %872
        %874 = vrot.lane.b32.xlu0 %v803, 32
        %v875 = vpop.permute.xlu0 %874
        %876 = vrot.lane.b32.xlu0 %v804, 32
        %v877 = vpop.permute.xlu0 %876
        %v886 = vmul.f32 %v691, %v863
        %v887 = vmul.f32 %v706, %v865
        %v888 = vmul.f32 %v721, %v867
        %v889 = vmul.f32 %v736, %v869
        %v890 = vmul.f32 %v751, %v871
        %v891 = vmul.f32 %v766, %v873
        %v892 = vmul.f32 %v781, %v875
        %v893 = vmul.f32 %v796, %v877
        %902 = vrot.lane.b32.xlu0 %v886, 32
        %v903 = vpop.permute.xlu0 %902
        %904 = vrot.lane.b32.xlu0 %v887, 32
        %v905 = vpop.permute.xlu0 %904
        %906 = vrot.lane.b32.xlu0 %v888, 32
        %v907 = vpop.permute.xlu0 %906
        %908 = vrot.lane.b32.xlu0 %v889, 32
        %v909 = vpop.permute.xlu0 %908
        %910 = vrot.lane.b32.xlu0 %v890, 32
        %v911 = vpop.permute.xlu0 %910
        %912 = vrot.lane.b32.xlu0 %v891, 32
        %v913 = vpop.permute.xlu0 %912
        %914 = vrot.lane.b32.xlu0 %v892, 32
        %v915 = vpop.permute.xlu0 %914
        %916 = vrot.lane.b32.xlu0 %v893, 32
        %v917 = vpop.permute.xlu0 %916
        %v926 = vadd.f32 %v846, %v903
        %v927 = vadd.f32 %v847, %v905
        %v928 = vadd.f32 %v848, %v907
        %v929 = vadd.f32 %v849, %v909
        %v930 = vadd.f32 %v850, %v911
        %v931 = vadd.f32 %v851, %v913
        %v932 = vadd.f32 %v852, %v915
        %v933 = vadd.f32 %v853, %v917
        %v934 = vtanh.pop %v926
        %v935 = vtanh.pop %v927
        %v936 = vtanh.pop %v928
        %v937 = vtanh.pop %v929
        %v938 = vtanh.pop %v930
        %v939 = vtanh.pop %v931
        %v940 = vtanh.pop %v932
        %v941 = vtanh.pop %v933
        %950 = vrot.lane.b32.xlu0 %v934, 32
        %v951 = vpop.permute.xlu0 %950
        %952 = vrot.lane.b32.xlu0 %v935, 32
        %v953 = vpop.permute.xlu0 %952
        %954 = vrot.lane.b32.xlu0 %v936, 32
        %v955 = vpop.permute.xlu0 %954
        %956 = vrot.lane.b32.xlu0 %v937, 32
        %v957 = vpop.permute.xlu0 %956
        %958 = vrot.lane.b32.xlu0 %v938, 32
        %v959 = vpop.permute.xlu0 %958
        %960 = vrot.lane.b32.xlu0 %v939, 32
        %v961 = vpop.permute.xlu0 %960
        %962 = vrot.lane.b32.xlu0 %v940, 32
        %v963 = vpop.permute.xlu0 %962
        %964 = vrot.lane.b32.xlu0 %v941, 32
        %v965 = vpop.permute.xlu0 %964
        %v974 = vmul.f32 %v691, %v951
        %v975 = vmul.f32 %v706, %v953
        %v976 = vmul.f32 %v721, %v955
        %v977 = vmul.f32 %v736, %v957
        %v978 = vmul.f32 %v751, %v959
        %v979 = vmul.f32 %v766, %v961
        %v980 = vmul.f32 %v781, %v963
        %v981 = vmul.f32 %v796, %v965
        %990 = vrot.lane.b32.xlu0 %v974, 64
        %v991 = vpop.permute.xlu0 %990
        %992 = vrot.lane.b32.xlu0 %v975, 64
        %v993 = vpop.permute.xlu0 %992
        %994 = vrot.lane.b32.xlu0 %v976, 64
        %v995 = vpop.permute.xlu0 %994
        %996 = vrot.lane.b32.xlu0 %v977, 64
        %v997 = vpop.permute.xlu0 %996
        %998 = vrot.lane.b32.xlu0 %v978, 64
        %v999 = vpop.permute.xlu0 %998
        %1000 = vrot.lane.b32.xlu0 %v979, 64
        %v1001 = vpop.permute.xlu0 %1000
        %1002 = vrot.lane.b32.xlu0 %v980, 64
        %v1003 = vpop.permute.xlu0 %1002
        %1004 = vrot.lane.b32.xlu0 %v981, 64
        %v1005 = vpop.permute.xlu0 %1004
        %s1014 = scalar_lea.vmem %s217, %s226
        %vm1015 = vcmask 261120
        %1016 = vst.msk [vmem:[%s1014] sm:$0xff] %vm1015, %v991
        %1017 = vst.msk [vmem:[%s1014 + $0x8] sm:$0xff] %vm1015, %v993
        %1018 = vst.msk [vmem:[%s1014 + $0x10] sm:$0xff] %vm1015, %v995
        %1019 = vst.msk [vmem:[%s1014 + $0x18] sm:$0xff] %vm1015, %v997
        %1020 = vst.msk [vmem:[%s1014 + $0x20] sm:$0xff] %vm1015, %v999
        %1021 = vst.msk [vmem:[%s1014 + $0x28] sm:$0xff] %vm1015, %v1001
        %1022 = vst.msk [vmem:[%s1014 + $0x30] sm:$0xff] %vm1015, %v1003
        %1023 = vst.msk [vmem:[%s1014 + $0x38] sm:$0xff] %vm1015, %v1005
        %vm1024 = vcmask 523520
        %1025 = vst.msk [vmem:[%s1014] sm:$0xff] %vm1024, %v926
        %1026 = vst.msk [vmem:[%s1014 + $0x8] sm:$0xff] %vm1024, %v927
        %1027 = vst.msk [vmem:[%s1014 + $0x10] sm:$0xff] %vm1024, %v928
        %1028 = vst.msk [vmem:[%s1014 + $0x18] sm:$0xff] %vm1024, %v929
        %1029 = vst.msk [vmem:[%s1014 + $0x20] sm:$0xff] %vm1024, %v930
        %1030 = vst.msk [vmem:[%s1014 + $0x28] sm:$0xff] %vm1024, %v931
        %1031 = vst.msk [vmem:[%s1014 + $0x30] sm:$0xff] %vm1024, %v932
        %1032 = vst.msk [vmem:[%s1014 + $0x38] sm:$0xff] %vm1024, %v933
      $region41: #{conv_lstm_forward.1} parent=35 // loop_footer
        %s225 = sadd.s32 1, %s221
      $region42: #{conv_lstm_forward.1} parent=35 // loop_footer_branch
        %220 = sbr.rel target = $region38
      $region43: #{conv_lstm_forward.1} parent=35 // loop_exit
        _
      %p1033 = scmp.lt.s32.totalorder %s15, 1
      %s1034 = scalar_select %p1033, %s15, 1
      %s1035 = smul.addr %s1034, 32
      %s1036 = smul.addr %s1035, 8
      %s1037 = scalar_lea.vmem %s4, %s1036
      // Predicated region
      $region44: #{conv_lstm_forward.1} parent=35 // pred_check
        %p1038 = pneg %p127
      $region45: #{conv_lstm_forward.1} parent=35 // pred_check_branch
        %1040 = sbr.rel (%p1038) target = $region47
      $region46: #{conv_lstm_forward.1} parent=35 // pred_region
        _
      $region47: #{conv_lstm_forward.1} parent=35 // pred_fallthru
        _
    $region36: #{conv_lstm_forward.1} parent=5 // pred_fallthru
      _
    %p1041 = scmp.le.s32.totalorder 2, %s10
    // Predicated region
    $region48: #{conv_lstm_forward.1} parent=5 // pred_check
      %p1042 = pneg %p1041
    $region49: #{conv_lstm_forward.1} parent=5 // pred_check_branch
      %1044 = sbr.rel (%p1042) target = $region51
    $region50: #{conv_lstm_forward.1} parent=5 // pred_region
      %s1045 = ssub.s32 %s10, 2
      // Predicated region
      $region52: #{conv_lstm_forward.1} parent=50 // pred_check
        %p1046 = pneg %p133
      $region53: #{conv_lstm_forward.1} parent=50 // pred_check_branch
        %1048 = sbr.rel (%p1046) target = $region55
      $region54: #{conv_lstm_forward.1} parent=50 // pred_region
        %p1049 = scmp.lt.s32.totalorder %s16, 1
        %s1050 = scalar_select %p1049, %s16, 1
        %s1051 = smul.addr %s1050, 32
        %s1052 = smul.addr %s1051, 8
        %s1053 = scalar_lea.vmem %s4, %s1052
      $region55: #{conv_lstm_forward.1} parent=50 // pred_fallthru
        _
    $region51: #{conv_lstm_forward.1} parent=5 // pred_fallthru
      _
  $region6: #{conv_lstm_forward.1} parent=0 // loop_footer
    %s14 = sadd.s32 1, %s10
  $region7: #{conv_lstm_forward.1} parent=0 // loop_footer_branch
    %9 = sbr.rel target = $region3
  $region8: #{conv_lstm_forward.1} parent=0 // loop_exit
    _

</llo_original>
